<compile_context>
chip_gen: v6e
topology: v6e:2x2x1
jax: 0.10.0
libtpu: 0.0.40
codegen_flags: <defaults>
</compile_context>

<pallas_src>
import functools

import jax
import jax.numpy as jnp
from jax.experimental import pallas as pl
from jax.experimental.pallas import tpu as pltpu

EPS = 1e-5


def _vmem_limit_bytes():
    """Generation-aware scoped-VMEM limit (96 MiB on v5e/v6e, 48 MiB on v7x)."""
    try:
        cap = int(pltpu.get_tpu_info().vmem_capacity_bytes)
    except Exception:
        cap = 64 * 1024 * 1024          # conservative (v7x physical per-TC)
    return min(cap * 3 // 4, 96 * 1024 * 1024)


def _pick_tiles(rows, s, itemsize, vmem_limit):
    """Pick (row_tile, s_tile) for an (rows, s) view under a per-buffer budget."""
    tile_bytes = max(128 * 1024, vmem_limit // 8)

    # Lane (minor) dim: multiple of 128 (partial edge block is legal, masked in
    # pass 1), or the full dim when S <= 128.
    if s <= 128:
        s_tile = s
    else:
        min_rows = 8 if rows >= 8 else rows
        max_lanes = max(128, (tile_bytes // (min_rows * itemsize)) // 128 * 128)
        s_tile = min((s // 128) * 128, max_lanes)

    # Sublane (second-minor) dim: multiple of 8 (partial edge rows are clipped
    # on writeback and never pollute per-row stats), or the full dim.
    if rows < 8:
        row_tile = rows
    else:
        max_rows = max(8, (tile_bytes // (s_tile * itemsize)) // 8 * 8)
        # Keep a few row blocks for megacore sharding / pipelining when possible.
        grid_cap = max(8, ((rows // 4) // 8) * 8) if rows >= 32 else 8
        row_tile = min(max_rows, grid_cap, (rows // 8) * 8)

    return row_tile, s_tile


def _bn_stats_kernel(x_ref, sum_ref, sq_ref, acc_sum, acc_sq, *, s_rem):
    """Per-row sum / sum-of-squares over the S axis (f32 accumulation)."""
    s_id = pl.program_id(1)
    last = pl.num_programs(1) - 1

    @pl.when(s_id == 0)
    def _():
        acc_sum[...] = jnp.zeros_like(acc_sum)
        acc_sq[...] = jnp.zeros_like(acc_sq)

    x = x_ref[...].astype(jnp.float32)          # (row_tile, s_tile)

    def _accumulate(xv):
        # Cross-lane reduce (XLU slot) -> only (row_tile, 1) scratch traffic.
        acc_sum[...] += jnp.sum(xv, axis=1, keepdims=True)
        acc_sq[...] += jnp.sum(xv * xv, axis=1, keepdims=True)

    if s_rem == 0:
        _accumulate(x)                          # unmasked fast path, all tiles
    else:
        @pl.when(s_id != last)
        def _():
            _accumulate(x)

        @pl.when(s_id == last)                  # only the partial tile pays
        def _():
            lane = jax.lax.broadcasted_iota(jnp.int32, x.shape, 1)
            _accumulate(jnp.where(lane < s_rem, x, 0.0))

    @pl.when(s_id == last)
    def _():
        sum_ref[...] = acc_sum[...]
        sq_ref[...] = acc_sq[...]


def _bn_apply_kernel(x_ref, scale_ref, shift_ref, o_ref):
    """y = max(x * scale + shift, 0), computed in x's dtype (bf16 stays bf16)."""
    x = x_ref[...]
    scale = scale_ref[...].astype(x.dtype)      # (row_tile, 1) — negligible cast
    shift = shift_ref[...].astype(x.dtype)
    o_ref[...] = jnp.maximum(x * scale + shift, 0.0).astype(o_ref.dtype)


def batchnorm_relu(x, gamma, beta):
    """x: (N, C, D, H, W); gamma/beta: (C,). Returns (N, C, D, H, W)."""
    n, c, d, h, w = x.shape
    s = d * h * w
    rows = n * c
    m = n * s

    x2 = x.reshape(rows, s)                     # free (contiguous collapse)
    itemsize = jnp.dtype(x.dtype).itemsize

    vmem_limit = _vmem_limit_bytes()
    row_tile, s_tile = _pick_tiles(rows, s, itemsize, vmem_limit)
    r_blocks = pl.cdiv(rows, row_tile)
    s_blocks = pl.cdiv(s, s_tile)
    s_rem = s % s_tile

    x_spec = pl.BlockSpec((row_tile, s_tile), lambda r, si: (r, si))
    rvec_spec = pl.BlockSpec((row_tile, 1), lambda r, si: (r, 0))

    # ---- Pass 1: per-row statistics (megacore-shardable over row blocks). ----
    sums, sqs = pl.pallas_call(
        functools.partial(_bn_stats_kernel, s_rem=s_rem),
        out_shape=(jax.ShapeDtypeStruct((rows, 1), jnp.float32),
                   jax.ShapeDtypeStruct((rows, 1), jnp.float32)),
        grid_spec=pltpu.PrefetchScalarGridSpec(
            num_scalar_prefetch=0,
            grid=(r_blocks, s_blocks),
            in_specs=[x_spec],
            out_specs=(rvec_spec, rvec_spec),
            scratch_shapes=[pltpu.VMEM((row_tile, 1), jnp.float32),
                            pltpu.VMEM((row_tile, 1), jnp.float32)]),
        compiler_params=pltpu.CompilerParams(
            dimension_semantics=("parallel", "arbitrary"),
            vmem_limit_bytes=vmem_limit),
    )(x2)

    # ---- Tiny cross-sample combine + fused scale/shift in plain JAX. ----
    sum_c = sums.reshape(n, c).sum(axis=0)
    sq_c = sqs.reshape(n, c).sum(axis=0)
    mean = sum_c / m
    var = jnp.maximum(sq_c / m - mean * mean, 0.0)          # biased var, clamped
    inv_std = jax.lax.rsqrt(var + EPS)
    scale_c = gamma.astype(jnp.float32) * inv_std           # (C,)
    shift_c = beta.astype(jnp.float32) - mean * scale_c
    scale = jnp.tile(scale_c, n).reshape(rows, 1)           # per-row tables
    shift = jnp.tile(shift_c, n).reshape(rows, 1)

    # ---- Pass 2: normalize + ReLU, fully parallel streaming pass. ----
    out2 = pl.pallas_call(
        _bn_apply_kernel,
        out_shape=jax.ShapeDtypeStruct((rows, s), x.dtype),
        grid_spec=pltpu.PrefetchScalarGridSpec(
            num_scalar_prefetch=0,
            grid=(r_blocks, s_blocks),
            in_specs=[x_spec, rvec_spec, rvec_spec],
            out_specs=x_spec),
        compiler_params=pltpu.CompilerParams(
            dimension_semantics=("parallel", "parallel"),
            vmem_limit_bytes=vmem_limit),
    )(x2, scale, shift)

    return out2.reshape(n, c, d, h, w)


def _reference(x, gamma, beta):
    # plain-JAX reference of BatchNorm3d(train) + ReLU
    mean = jnp.mean(x, axis=(0, 2, 3, 4), keepdims=True)
    var = jnp.mean((x - mean) ** 2, axis=(0, 2, 3, 4), keepdims=True)
    g = gamma.reshape(1, -1, 1, 1, 1)
    b = beta.reshape(1, -1, 1, 1, 1)
    y = (x - mean) / jnp.sqrt(var + EPS) * g + b
    return jnp.maximum(y, 0.0)


if __name__ == "__main__":
    key = jax.random.PRNGKey(0)
    kx, kg, kb = jax.random.split(key, 3)
    N, C, D, H, W = 2, 4, 4, 8, 8
    x = jax.random.normal(kx, (N, C, D, H, W), dtype=jnp.float32)

    # nn.BatchNorm3d default init is weight=1, bias=0; perturb slightly to also
    # exercise the learned-affine path of the kernel.
    gamma = 1.0 + 0.1 * jax.random.normal(kg, (C,), dtype=jnp.float32)
    beta = 0.1 * jax.random.normal(kb, (C,), dtype=jnp.float32)

    out = batchnorm_relu(x, gamma, beta)
    out = jax.block_until_ready(out)

    ref = _reference(x, gamma, beta)
    assert out.shape == (N, C, D, H, W)
    assert jnp.allclose(out, ref, atol=1e-4, rtol=1e-4), "mismatch vs reference"

    print("KERNEL_OK")
</pallas_src>

<mosaic_0001>
module attributes {stable_mosaic.version = 11 : i64} {
  func.func @_bn_stats_kernel(%arg0: i32, %arg1: i32, %arg2: memref<8x256xf32, #tpu.memory_space<vmem>>, %arg3: memref<8x1xf32, #tpu.memory_space<vmem>>, %arg4: memref<8x1xf32, #tpu.memory_space<vmem>>, %arg5: memref<8x1xf32, #tpu.memory_space<vmem>>, %arg6: memref<8x1xf32, #tpu.memory_space<vmem>>) attributes {dimension_semantics = [#tpu.dimension_semantics<parallel>, #tpu.dimension_semantics<arbitrary>], iteration_bounds = array<i64: 1, 1>, scalar_prefetch = 0 : i64, scratch_operands = 2 : i64, tpu.core_type = #tpu.core_type<tc>, window_params = [{transform_indices = @transform_0, window_bounds = array<i64: 8, 256>}, {transform_indices = @transform_1, window_bounds = array<i64: 8, 1>}, {transform_indices = @transform_2, window_bounds = array<i64: 8, 1>}]} {
    %c0_i32 = arith.constant 0 : i32
    %0 = arith.cmpi eq, %arg1, %c0_i32 : i32
    %1 = arith.extui %0 : i1 to i32
    %c0_i32_0 = arith.constant 0 : i32
    %2 = arith.cmpi ne, %1, %c0_i32_0 : i32
    scf.if %2 {
      %cst_13 = arith.constant 0.000000e+00 : f32
      %18 = vector.broadcast %cst_13 : f32 to vector<8x1xf32>
      %c0_14 = arith.constant 0 : index
      %c0_15 = arith.constant 0 : index
      %19 = vector.load %arg5[%c0_14, %c0_15] : memref<8x1xf32, #tpu.memory_space<vmem>>, vector<8x1xf32>
      tpu.vector_store %arg5[%c0_14, %c0_15], %18 {strides = array<i32>} : memref<8x1xf32, #tpu.memory_space<vmem>>, vector<8x1xf32>,
      %cst_16 = arith.constant 0.000000e+00 : f32
      %20 = vector.broadcast %cst_16 : f32 to vector<8x1xf32>
      %c0_17 = arith.constant 0 : index
      %c0_18 = arith.constant 0 : index
      %21 = vector.load %arg6[%c0_17, %c0_18] : memref<8x1xf32, #tpu.memory_space<vmem>>, vector<8x1xf32>
      tpu.vector_store %arg6[%c0_17, %c0_18], %20 {strides = array<i32>} : memref<8x1xf32, #tpu.memory_space<vmem>>, vector<8x1xf32>,
    } else {
    }
    %c0 = arith.constant 0 : index
    %c0_1 = arith.constant 0 : index
    %3 = vector.load %arg2[%c0, %c0_1] : memref<8x256xf32, #tpu.memory_space<vmem>>, vector<8x256xf32>
    %c0_2 = arith.constant 0 : index
    %c0_3 = arith.constant 0 : index
    %4 = vector.load %arg5[%c0_2, %c0_3] : memref<8x1xf32, #tpu.memory_space<vmem>>, vector<8x1xf32>
    %cst = arith.constant dense<0.000000e+00> : vector<8xf32>
    %5 = vector.multi_reduction <add>, %3, %cst [1] : vector<8x256xf32> to vector<8xf32>
    %6 = vector.shape_cast %5 : vector<8xf32> to vector<8x1xf32>
    %7 = arith.addf %4, %6 : vector<8x1xf32>
    %c0_4 = arith.constant 0 : index
    %c0_5 = arith.constant 0 : index
    %8 = vector.load %arg5[%c0_4, %c0_5] : memref<8x1xf32, #tpu.memory_space<vmem>>, vector<8x1xf32>
    tpu.vector_store %arg5[%c0_4, %c0_5], %7 {strides = array<i32>} : memref<8x1xf32, #tpu.memory_space<vmem>>, vector<8x1xf32>,
    %c0_6 = arith.constant 0 : index
    %c0_7 = arith.constant 0 : index
    %9 = vector.load %arg6[%c0_6, %c0_7] : memref<8x1xf32, #tpu.memory_space<vmem>>, vector<8x1xf32>
    %10 = arith.mulf %3, %3 : vector<8x256xf32>
    %cst_8 = arith.constant dense<0.000000e+00> : vector<8xf32>
    %11 = vector.multi_reduction <add>, %10, %cst_8 [1] : vector<8x256xf32> to vector<8xf32>
    %12 = vector.shape_cast %11 : vector<8xf32> to vector<8x1xf32>
    %13 = arith.addf %9, %12 : vector<8x1xf32>
    %c0_9 = arith.constant 0 : index
    %c0_10 = arith.constant 0 : index
    %14 = vector.load %arg6[%c0_9, %c0_10] : memref<8x1xf32, #tpu.memory_space<vmem>>, vector<8x1xf32>
    tpu.vector_store %arg6[%c0_9, %c0_10], %13 {strides = array<i32>} : memref<8x1xf32, #tpu.memory_space<vmem>>, vector<8x1xf32>,
    %c0_i32_11 = arith.constant 0 : i32
    %15 = arith.cmpi eq, %arg1, %c0_i32_11 : i32
    %16 = arith.extui %15 : i1 to i32
    %c0_i32_12 = arith.constant 0 : i32
    %17 = arith.cmpi ne, %16, %c0_i32_12 : i32
    scf.if %17 {
      %c0_13 = arith.constant 0 : index
      %c0_14 = arith.constant 0 : index
      %18 = vector.load %arg5[%c0_13, %c0_14] : memref<8x1xf32, #tpu.memory_space<vmem>>, vector<8x1xf32>
      %c0_15 = arith.constant 0 : index
      %c0_16 = arith.constant 0 : index
      %19 = vector.load %arg3[%c0_15, %c0_16] : memref<8x1xf32, #tpu.memory_space<vmem>>, vector<8x1xf32>
      tpu.vector_store %arg3[%c0_15, %c0_16], %18 {strides = array<i32>} : memref<8x1xf32, #tpu.memory_space<vmem>>, vector<8x1xf32>,
      %c0_17 = arith.constant 0 : index
      %c0_18 = arith.constant 0 : index
      %20 = vector.load %arg6[%c0_17, %c0_18] : memref<8x1xf32, #tpu.memory_space<vmem>>, vector<8x1xf32>
      %c0_19 = arith.constant 0 : index
      %c0_20 = arith.constant 0 : index
      %21 = vector.load %arg4[%c0_19, %c0_20] : memref<8x1xf32, #tpu.memory_space<vmem>>, vector<8x1xf32>
      tpu.vector_store %arg4[%c0_19, %c0_20], %20 {strides = array<i32>} : memref<8x1xf32, #tpu.memory_space<vmem>>, vector<8x1xf32>,
    } else {
    }
    return
  }
  func.func @transform_0(%arg0: i32, %arg1: i32) -> (i32, i32) {
    %c0_i32 = arith.constant 0 : i32
    return %arg0, %arg1 : i32, i32
  }
  func.func @transform_1(%arg0: i32, %arg1: i32) -> (i32, i32) {
    %c0_i32 = arith.constant 0 : i32
    %c0_i32_0 = arith.constant 0 : i32
    return %arg0, %c0_i32 : i32, i32
  }
  func.func @transform_2(%arg0: i32, %arg1: i32) -> (i32, i32) {
    %c0_i32 = arith.constant 0 : i32
    %c0_i32_0 = arith.constant 0 : i32
    return %arg0, %c0_i32 : i32, i32
  }
}

</mosaic_0001>

<llo_original>
// kernel: tpu_custom_call.1
$region0: #{tpu_custom_call.1}
  #allocation0 [shape = 'u32[]', space=smem, size = 0x4, offset = 0x4, fixed_abs, tag = 'smem constant byte address 0x4 - core index']
  #allocation1 [shape = 'u32[144,128]{1,0:T(1,128)}', space=vmem, size = 0x12000, scoped, tag = 'internal scratch']
  #allocation2 [shape = 'f32[8,1]{1,0:T(8,128)}', space=vmem, size = 0x1000, scoped, tag = 'scratch operand']
  #allocation3 [shape = 'f32[8,1]{1,0:T(8,128)}', space=vmem, size = 0x1000, scoped, tag = 'scratch operand']
  %s0 = inlined_call_operand.hbm [shape: f32[8,256], index: 0, kind: input, shape index: {}]
  %s1 = inlined_call_operand.vmem [shape: f32[8,1], index: 1, kind: output, shape index: {0}]
  %s2 = inlined_call_operand.vmem [shape: f32[8,1], index: 2, kind: output, shape index: {1}]
  %3 = xla_tuple %s1, %s2
  %s4 = sld [smem:[#allocation0]]
  $region34: #{tpu_custom_call.1} parent=0
    _
  %s6 = ssub.s32 1, %s4
  %s7 = scalar_select 0, %s6, %s4
  $region1: #{tpu_custom_call.1} parent=0
    #allocation4 [shape = 'u8[8192]{0}', space=vmem, size = 0x2000, scoped, tag = 'input window, operand 0, single buffered']
    #allocation5 [shape = 's32[1]{0}', space=sflag, size = 0x4, scoped, tag = 'scoped memory for tpu_custom_call.1']
    %8 = vsyncpa [#allocation5], 0
    // Predicated region
    $region2: #{tpu_custom_call.1} parent=1 // pred_check
      _
    $region3: #{tpu_custom_call.1} parent=1 // pred_check_branch
      %10 = sbr.rel (0) target = $region5
    $region4: #{tpu_custom_call.1} parent=1 // pred_region
      %s12 = ssub.s32 256, 256
      %13 = vsyncadd [#allocation5], %s12
      %s15 = sshll.u32 [#allocation4], 4
      %s16 = int_to_ptr.vmem [resolvable:$true] %s15
      %18 = dma.hbm_to_vmem [thread:$0]  %s0, 256, %s16, [#allocation5]
    $region5: #{tpu_custom_call.1} parent=1 // pred_fallthru
      _
    // Predicated region
    $region6: #{tpu_custom_call.1} parent=1 // pred_check
      _
    $region7: #{tpu_custom_call.1} parent=1 // pred_check_branch
      %20 = sbr.rel (0) target = $region9
    $region8: #{tpu_custom_call.1} parent=1 // pred_region
      %21 = dma.done [#allocation5], 256
    $region9: #{tpu_custom_call.1} parent=1 // pred_fallthru
      _
    %p22 = scmp.eq.s32.totalorder 0, 0
    // Predicated region
    $region10: #{tpu_custom_call.1} parent=1 // pred_check
      %p23 = pneg %p22
    $region11: #{tpu_custom_call.1} parent=1 // pred_check_branch
      %25 = sbr.rel (%p23) target = $region13
    $region12: #{tpu_custom_call.1} parent=1 // pred_region
      %vm26 = vcmask 7168
      %27 = vst.msk [vmem:[#allocation2] sm:$0xff] %vm26, 0.0
      %28 = vst.msk [vmem:[#allocation3] sm:$0xff] %vm26, 0.0
    $region13: #{tpu_custom_call.1} parent=1 // pred_fallthru
      _
    %v29 = vld [vmem:[#allocation4] sm:$0xff]
    %v30 = vld [vmem:[#allocation4 + $0x8] sm:$0xff]
    %v31 = vld [vmem:[#allocation2] sm:$0xff]
    %v32 = vadd.f32 %v29, %v30
    %33 = vadd.xlane.f32.xlu0 %v32
    %v34 = vpop.xlane.xlu0 %33
    %v35 = vadd.f32 %v31, %v34
    %vm36 = vcmask 7168
    %37 = vst.msk [vmem:[#allocation2] sm:$0xff] %vm36, %v35
    %v38 = vld [vmem:[#allocation3] sm:$0xff]
    %v39 = vmul.f32 %v29, %v29
    %v40 = vmul.f32 %v30, %v30
    %v41 = vadd.f32 %v39, %v40
    %42 = vadd.xlane.f32.xlu0 %v41
    %v43 = vpop.xlane.xlu0 %42
    %v44 = vadd.f32 %v38, %v43
    %45 = vst.msk [vmem:[#allocation3] sm:$0xff] %vm36, %v44
    // Predicated region
    $region14: #{tpu_custom_call.1} parent=1 // pred_check
      %p46 = pneg %p22
    $region15: #{tpu_custom_call.1} parent=1 // pred_check_branch
      %48 = sbr.rel (%p46) target = $region17
    $region16: #{tpu_custom_call.1} parent=1 // pred_region
      %v49 = vld [vmem:[#allocation2] sm:$0xff]
      %50 = vst.msk [vmem:[%s1] sm:$0xff] %vm36, %v49
      %v51 = vld [vmem:[#allocation3] sm:$0xff]
      %52 = vst.msk [vmem:[%s2] sm:$0xff] %vm36, %v51
    $region17: #{tpu_custom_call.1} parent=1 // pred_fallthru
      _
    // Predicated region
    $region18: #{tpu_custom_call.1} parent=1 // pred_check
      _
    $region19: #{tpu_custom_call.1} parent=1 // pred_check_branch
      %54 = sbr.rel (0) target = $region21
    $region20: #{tpu_custom_call.1} parent=1 // pred_region
      _
    $region21: #{tpu_custom_call.1} parent=1 // pred_fallthru
      _
    // Predicated region
    $region22: #{tpu_custom_call.1} parent=1 // pred_check
      _
    $region23: #{tpu_custom_call.1} parent=1 // pred_check_branch
      %56 = sbr.rel (0) target = $region25
    $region24: #{tpu_custom_call.1} parent=1 // pred_region
      _
    $region25: #{tpu_custom_call.1} parent=1 // pred_fallthru
      _
    // Predicated region
    $region26: #{tpu_custom_call.1} parent=1 // pred_check
      _
    $region27: #{tpu_custom_call.1} parent=1 // pred_check_branch
      %58 = sbr.rel (0) target = $region29
    $region28: #{tpu_custom_call.1} parent=1 // pred_region
      _
    $region29: #{tpu_custom_call.1} parent=1 // pred_fallthru
      _
    // Predicated region
    $region30: #{tpu_custom_call.1} parent=1 // pred_check
      _
    $region31: #{tpu_custom_call.1} parent=1 // pred_check_branch
      %60 = sbr.rel (0) target = $region33
    $region32: #{tpu_custom_call.1} parent=1 // pred_region
      _
    $region33: #{tpu_custom_call.1} parent=1 // pred_fallthru
      _
    %61 = vsyncpa [#allocation5], 1

</llo_original>
